<compile_context>
chip_gen: v5e
topology: v5e:2x2
jax: 0.10.0
libtpu: 0.0.40
codegen_flags: <defaults>
</compile_context>

<pallas_src>
import functools

import jax
import jax.numpy as jnp
from jax import lax
from jax.experimental import pallas as pl
from jax.experimental.pallas import tpu as pltpu

EPS = 1e-5  # nn.BatchNorm2d default
_LANE = 128
_VMEM = pl.BlockSpec(memory_space=pltpu.MemorySpace.VMEM)


def _round_up(x, m):
    return (x + m - 1) // m * m


# ------------------------------ fused kernel ------------------------------- #

def _residual_kernel(x1_ref, spool_ref, w1t_ref, w2t_ref, w3t_ref, w4t_ref,
                     bn_ref, mask1_ref, maskpr_ref, o_ref, *, ow1, pw, counts):
    f32 = jnp.float32
    bf16 = jnp.bfloat16

    def roll_taps(x, row_stride):
        """tap_{i,j}[c, m] = x[c, m + i*row_stride + j] for the 3x3 window."""
        n = x.shape[-1]
        taps = []
        for i in range(3):
            for j in range(3):
                d = i * row_stride + j
                taps.append(x if d == 0 else pltpu.roll(x, n - d, axis=1))
        return taps

    def epilogue(y_pre, stage, mask, count):
        """conv bias + ReLU + BatchNorm (training batch stats), channel-major."""
        b = bn_ref[:, 3 * stage + 0:3 * stage + 1]       # [Cmax, 1]
        g = bn_ref[:, 3 * stage + 1:3 * stage + 2]
        beta = bn_ref[:, 3 * stage + 2:3 * stage + 3]
        y = jnp.maximum(y_pre + b, 0.0)
        inv = 1.0 / count                                 # static
        mean = jnp.sum(y * mask, axis=-1, keepdims=True) * inv
        dev = (y - mean) * mask                           # two-pass variance
        var = jnp.sum(dev * dev, axis=-1, keepdims=True) * inv
        return (y - mean) * lax.rsqrt(var + EPS) * g + beta

    mask1 = mask1_ref[...]                                # [1, M1p]
    maskp = maskpr_ref[0:1, :]                            # [1, Mpp]
    maskr = maskpr_ref[1:2, :]                            # [1, Mpp]

    # --- local_conv[0]: Conv(k, pad=1) + ReLU + BN, channel-major ---------- #
    y1 = epilogue(
        jnp.dot(w1t_ref[...], x1_ref[...], preferred_element_type=f32),
        0, mask1, counts[0])                              # [Cmax, M1p]

    # --- local_conv[1]: MaxPool2d(3, 2) ------------------------------------ #
    # 9 lane-roll taps (XLU) + pointwise max (VPU) + ONE stride-2 downselect.
    taps1 = roll_taps(y1, ow1)
    pooled_full = taps1[0]
    for t in taps1[1:]:
        pooled_full = jnp.maximum(pooled_full, t)
    pooled = jnp.dot(pooled_full.astype(bf16), spool_ref[...],
                     preferred_element_type=f32)          # [Cmax, Mpp]

    # --- residual[0]: Conv 1x1 + ReLU + BN --------------------------------- #
    y2 = epilogue(
        jnp.dot(w2t_ref[...], pooled.astype(bf16), preferred_element_type=f32),
        1, maskp, counts[1])                              # [Cmax, Mpp]

    # --- residual[1]: Conv 3x3 (valid) as ONE fused 72-deep matmul --------- #
    tap_stack = jnp.concatenate(roll_taps(y2, pw), axis=0).astype(bf16)
    y3 = epilogue(
        jnp.dot(w3t_ref[...], tap_stack, preferred_element_type=f32),
        2, maskr, counts[2])                              # [Cmax, Mpp]

    # --- residual[2]: Conv 1x1 + ReLU + BN --------------------------------- #
    y4 = epilogue(
        jnp.dot(w4t_ref[...], y3.astype(bf16), preferred_element_type=f32),
        3, maskr, counts[3])                              # [Cmax, Mpp]

    o_ref[...] = y4     # already channel-major & lane-dense (Mpp % 128 == 0)


# --------------------------------- glue ------------------------------------ #

def _pack_bn(params, cmax):
    """Pack (bias, gamma, beta) of the 4 stages into one [Cmax, 12] array."""
    cols = []
    for name in ('local', 'r1', 'r2', 'r3'):
        p = params[name]
        padw = (0, cmax - p['b'].shape[0])
        cols += [jnp.pad(p['b'], padw), jnp.pad(p['gamma'], padw),
                 jnp.pad(p['beta'], padw)]
    return jnp.stack(cols, axis=1).astype(jnp.float32)


def init_params(key, in_channel, out_channel, kernel_size):
    def conv_block(k, cin, cout, ks):
        k1, k2, k3, k4 = jax.random.split(k, 4)
        return dict(
            # weight flattened as [kh*kw*C_in, C_out] (HWIO reshaped)
            w=0.1 * jax.random.normal(k1, (ks * ks * cin, cout), jnp.float32),
            b=0.1 * jax.random.normal(k2, (cout,), jnp.float32),
            gamma=1.0 + 0.1 * jax.random.normal(k3, (cout,), jnp.float32),
            beta=0.1 * jax.random.normal(k4, (cout,), jnp.float32),
            k=ks,
        )
    keys = jax.random.split(key, 4)
    return dict(
        local=conv_block(keys[0], in_channel, 4, kernel_size),   # conv k, pad=1
        r1=conv_block(keys[1], 4, 8, 1),                         # conv 1x1
        r2=conv_block(keys[2], 8, 8, 3),                         # conv 3x3, no pad
        r3=conv_block(keys[3], 8, out_channel, 1),               # conv 1x1
    )


def residual_forward(x_nchw, params):
    f32, bf16 = jnp.float32, jnp.bfloat16
    x = jnp.transpose(x_nchw, (0, 2, 3, 1)).astype(f32)          # NCHW -> NHWC
    n, h, w, cin = x.shape
    ks = params['local']['k']

    # Static geometry.
    oh1, ow1 = h + 2 - ks + 1, w + 2 - ks + 1                    # conv pad=1
    ph, pw = (oh1 - 3) // 2 + 1, (ow1 - 3) // 2 + 1              # MaxPool2d(3,2)
    rh, rw = ph - 2, pw - 2                                      # 3x3 valid conv
    m1, mp, mr = n * oh1 * ow1, n * ph * pw, n * rh * rw
    m1p, mpp = _round_up(m1, _LANE), _round_up(mp, _LANE)

    # Channel-major im2col of the network input: rows (i, j, c), cols (n, h, w).
    xp = jnp.pad(x, ((0, 0), (1, 1), (1, 1), (0, 0)))
    cols = [xp[:, i:i + oh1, j:j + ow1, :] for i in range(ks) for j in range(ks)]
    x1 = jnp.stack(cols, axis=3).reshape(m1, ks * ks * cin).T    # [K1, M1]
    x1 = jnp.pad(x1, ((0, 0), (0, m1p - m1))).astype(bf16)

    # Weights, transposed to channel-major and zero-padded to a common Cmax.
    w1, w2, w3, w4 = (params[k]['w'] for k in ('local', 'r1', 'r2', 'r3'))
    c1, c2, c3, c4 = w1.shape[1], w2.shape[1], w3.shape[1], w4.shape[1]
    cmax = max(c1, c2, c3, c4)
    w1t = jnp.pad(w1.T, ((0, cmax - c1), (0, 0))).astype(bf16)            # [Cmax, K1]
    w2t = jnp.pad(w2.T, ((0, cmax - c2), (0, cmax - c1))).astype(bf16)    # [Cmax, Cmax]
    w3r = jnp.pad(w3.reshape(9, c2, c3),
                  ((0, 0), (0, cmax - c2), (0, cmax - c3)))
    w3t = jnp.transpose(w3r, (2, 0, 1)).reshape(cmax, 9 * cmax).astype(bf16)
    w4t = jnp.pad(w4.T, ((0, cmax - c4), (0, cmax - c3))).astype(bf16)    # [Cmax, Cmax]
    bn = _pack_bn(params, cmax)                                           # [Cmax, 12]

    # Masks for the BN statistics + single stride-2 maxpool downselect matrix.
    mask1 = (jnp.arange(m1p) < m1).astype(f32)[None, :]                   # [1, M1p]
    q = jnp.arange(mpp)
    qn, qrem = q // (ph * pw), q % (ph * pw)
    qr, qc = qrem // pw, qrem % pw
    maskp = (q < mp).astype(f32)
    maskr = ((q < mp) & (qr < rh) & (qc < rw)).astype(f32)
    maskpr = jnp.stack([maskp, maskr], axis=0)                            # [2, Mpp]
    m0 = jnp.where(q < mp, (qn * oh1 + 2 * qr) * ow1 + 2 * qc, m1p)
    s_pool = jax.nn.one_hot(m0, m1p, dtype=bf16).T                        # [M1p, Mpp]

    kernel = functools.partial(
        _residual_kernel, ow1=ow1, pw=pw,
        counts=(float(m1), float(mp), float(mr), float(mr)))

    out = pl.pallas_call(
        kernel,
        out_shape=jax.ShapeDtypeStruct((cmax, mpp), f32),
        in_specs=[_VMEM] * 9,
        out_specs=_VMEM,
    )(x1, s_pool, w1t, w2t, w3t, w4t, bn, mask1, maskpr)

    # Drop channel / lane padding; lane columns are (n, r, c) row-major.
    out = out[:c4, :mp].reshape(c4, n, ph, pw)[:, :, :rh, :rw]
    return jnp.transpose(out, (1, 0, 2, 3))                              # NCHW


# ---------------------------- pure-JAX reference ---------------------------- #

def _ref_cabn(x, p, pad):
    ks = p['k']
    cin = x.shape[-1]
    w = p['w'].reshape(ks, ks, cin, -1)
    y = lax.conv_general_dilated(x, w, (1, 1), [(pad, pad), (pad, pad)],
                                 dimension_numbers=('NHWC', 'HWIO', 'NHWC'))
    y = jnp.maximum(y + p['b'], 0.0)
    mean = jnp.mean(y, axis=(0, 1, 2), keepdims=True)
    var = jnp.mean(jnp.square(y - mean), axis=(0, 1, 2), keepdims=True)
    return (y - mean) * lax.rsqrt(var + EPS) * p['gamma'] + p['beta']


def residual_ref(x_nchw, params):
    x = jnp.transpose(x_nchw, (0, 2, 3, 1)).astype(jnp.float32)
    x = _ref_cabn(x, params['local'], 1)
    x = lax.reduce_window(x, -jnp.inf, lax.max, (1, 3, 3, 1), (1, 2, 2, 1), 'VALID')
    x = _ref_cabn(x, params['r1'], 0)
    x = _ref_cabn(x, params['r2'], 0)
    x = _ref_cabn(x, params['r3'], 0)
    return jnp.transpose(x, (0, 3, 1, 2))


if __name__ == "__main__":
    key = jax.random.PRNGKey(0)
    kx, kp = jax.random.split(key)
    in_channel, out_channel, kernel_size = 4, 8, 3
    x = jax.random.normal(kx, (2, in_channel, 16, 16), jnp.float32)   # NCHW
    params = init_params(kp, in_channel, out_channel, kernel_size)

    out = jax.block_until_ready(residual_forward(x, params))
    ref = jax.block_until_ready(residual_ref(x, params))

    assert out.shape == (2, out_channel, 5, 5), out.shape
    err = float(jnp.max(jnp.abs(out - ref)))
    assert jnp.allclose(out, ref, rtol=5e-2, atol=5e-2), err
    print("KERNEL_OK")
</pallas_src>

<mosaic_0001>
module attributes {stable_mosaic.version = 11 : i64} {
  func.func @_residual_kernel(%arg0: memref<36x512xbf16, #tpu.memory_space<vmem>>, %arg1: memref<512x128xbf16, #tpu.memory_space<vmem>>, %arg2: memref<8x36xbf16, #tpu.memory_space<vmem>>, %arg3: memref<8x8xbf16, #tpu.memory_space<vmem>>, %arg4: memref<8x72xbf16, #tpu.memory_space<vmem>>, %arg5: memref<8x8xbf16, #tpu.memory_space<vmem>>, %arg6: memref<8x12xf32, #tpu.memory_space<vmem>>, %arg7: memref<1x512xf32, #tpu.memory_space<vmem>>, %arg8: memref<2x128xf32, #tpu.memory_space<vmem>>, %arg9: memref<8x128xf32, #tpu.memory_space<vmem>>) attributes {dimension_semantics = [], scalar_prefetch = 0 : i64, scratch_operands = 0 : i64, tpu.core_type = #tpu.core_type<tc>} {
    %c0 = arith.constant 0 : index
    %c0_0 = arith.constant 0 : index
    %0 = vector.load %arg7[%c0, %c0_0] : memref<1x512xf32, #tpu.memory_space<vmem>>, vector<1x512xf32>
    %c0_1 = arith.constant 0 : index
    %c0_2 = arith.constant 0 : index
    %1 = vector.load %arg8[%c0_1, %c0_2] : memref<2x128xf32, #tpu.memory_space<vmem>>, vector<1x128xf32>
    %c1 = arith.constant 1 : index
    %c0_3 = arith.constant 0 : index
    %2 = vector.load %arg8[%c1, %c0_3] : memref<2x128xf32, #tpu.memory_space<vmem>>, vector<1x128xf32>
    %c0_4 = arith.constant 0 : index
    %c0_5 = arith.constant 0 : index
    %3 = vector.load %arg2[%c0_4, %c0_5] : memref<8x36xbf16, #tpu.memory_space<vmem>>, vector<8x36xbf16>
    %c0_6 = arith.constant 0 : index
    %c0_7 = arith.constant 0 : index
    %4 = vector.load %arg0[%c0_6, %c0_7] : memref<36x512xbf16, #tpu.memory_space<vmem>>, vector<36x512xbf16>
    %cst = arith.constant dense<0.000000e+00> : vector<8x512xf32>
    %5 = tpu.matmul %3, %4, %cst {dimension_numbers = #tpu.dot_dimension_numbers<[1], [0], [0], [1], [0, 0, 1, 1], [], []>} : vector<8x36xbf16>, vector<36x512xbf16>, vector<8x512xf32> -> vector<8x512xf32>
    %c0_8 = arith.constant 0 : index
    %c0_9 = arith.constant 0 : index
    %6 = vector.load %arg6[%c0_8, %c0_9] : memref<8x12xf32, #tpu.memory_space<vmem>>, vector<8x1xf32>
    %c0_10 = arith.constant 0 : index
    %c1_11 = arith.constant 1 : index
    %7 = vector.load %arg6[%c0_10, %c1_11] : memref<8x12xf32, #tpu.memory_space<vmem>>, vector<8x1xf32>
    %c0_12 = arith.constant 0 : index
    %c2 = arith.constant 2 : index
    %8 = vector.load %arg6[%c0_12, %c2] : memref<8x12xf32, #tpu.memory_space<vmem>>, vector<8x1xf32>
    %9 = vector.broadcast %6 : vector<8x1xf32> to vector<8x512xf32>
    %10 = arith.addf %5, %9 : vector<8x512xf32>
    %cst_13 = arith.constant 0.000000e+00 : f32
    %11 = vector.broadcast %cst_13 : f32 to vector<8x512xf32>
    %12 = arith.maximumf %10, %11 : vector<8x512xf32>
    %13 = vector.broadcast %0 : vector<1x512xf32> to vector<8x512xf32>
    %14 = arith.mulf %12, %13 : vector<8x512xf32>
    %cst_14 = arith.constant dense<0.000000e+00> : vector<8xf32>
    %15 = vector.multi_reduction <add>, %14, %cst_14 [1] : vector<8x512xf32> to vector<8xf32>
    %16 = vector.shape_cast %15 : vector<8xf32> to vector<8x1xf32>
    %cst_15 = arith.constant 0.001953125 : f32
    %17 = vector.broadcast %cst_15 : f32 to vector<8x1xf32>
    %18 = arith.mulf %16, %17 : vector<8x1xf32>
    %19 = vector.broadcast %18 : vector<8x1xf32> to vector<8x512xf32>
    %20 = arith.subf %12, %19 : vector<8x512xf32>
    %21 = vector.broadcast %0 : vector<1x512xf32> to vector<8x512xf32>
    %22 = arith.mulf %20, %21 : vector<8x512xf32>
    %23 = arith.mulf %22, %22 : vector<8x512xf32>
    %cst_16 = arith.constant dense<0.000000e+00> : vector<8xf32>
    %24 = vector.multi_reduction <add>, %23, %cst_16 [1] : vector<8x512xf32> to vector<8xf32>
    %25 = vector.shape_cast %24 : vector<8xf32> to vector<8x1xf32>
    %cst_17 = arith.constant 0.001953125 : f32
    %26 = vector.broadcast %cst_17 : f32 to vector<8x1xf32>
    %27 = arith.mulf %25, %26 : vector<8x1xf32>
    %28 = vector.broadcast %18 : vector<8x1xf32> to vector<8x512xf32>
    %29 = arith.subf %12, %28 : vector<8x512xf32>
    %cst_18 = arith.constant 9.99999974E-6 : f32
    %30 = vector.broadcast %cst_18 : f32 to vector<8x1xf32>
    %31 = arith.addf %27, %30 : vector<8x1xf32>
    %32 = math.rsqrt %31 : vector<8x1xf32>
    %33 = vector.broadcast %32 : vector<8x1xf32> to vector<8x512xf32>
    %34 = arith.mulf %29, %33 : vector<8x512xf32>
    %35 = vector.broadcast %7 : vector<8x1xf32> to vector<8x512xf32>
    %36 = arith.mulf %34, %35 : vector<8x512xf32>
    %37 = vector.broadcast %8 : vector<8x1xf32> to vector<8x512xf32>
    %38 = arith.addf %36, %37 : vector<8x512xf32>
    %c511_i32 = arith.constant 511 : i32
    %39 = tpu.dynamic_rotate %38 by %c511_i32 dim 1 : vector<8x512xf32>, i32 -> vector<8x512xf32>
    %c510_i32 = arith.constant 510 : i32
    %40 = tpu.dynamic_rotate %38 by %c510_i32 dim 1 : vector<8x512xf32>, i32 -> vector<8x512xf32>
    %c496_i32 = arith.constant 496 : i32
    %41 = tpu.dynamic_rotate %38 by %c496_i32 dim 1 : vector<8x512xf32>, i32 -> vector<8x512xf32>
    %c495_i32 = arith.constant 495 : i32
    %42 = tpu.dynamic_rotate %38 by %c495_i32 dim 1 : vector<8x512xf32>, i32 -> vector<8x512xf32>
    %c494_i32 = arith.constant 494 : i32
    %43 = tpu.dynamic_rotate %38 by %c494_i32 dim 1 : vector<8x512xf32>, i32 -> vector<8x512xf32>
    %c480_i32 = arith.constant 480 : i32
    %44 = tpu.dynamic_rotate %38 by %c480_i32 dim 1 : vector<8x512xf32>, i32 -> vector<8x512xf32>
    %c479_i32 = arith.constant 479 : i32
    %45 = tpu.dynamic_rotate %38 by %c479_i32 dim 1 : vector<8x512xf32>, i32 -> vector<8x512xf32>
    %c478_i32 = arith.constant 478 : i32
    %46 = tpu.dynamic_rotate %38 by %c478_i32 dim 1 : vector<8x512xf32>, i32 -> vector<8x512xf32>
    %47 = arith.maximumf %38, %39 : vector<8x512xf32>
    %48 = arith.maximumf %47, %40 : vector<8x512xf32>
    %49 = arith.maximumf %48, %41 : vector<8x512xf32>
    %50 = arith.maximumf %49, %42 : vector<8x512xf32>
    %51 = arith.maximumf %50, %43 : vector<8x512xf32>
    %52 = arith.maximumf %51, %44 : vector<8x512xf32>
    %53 = arith.maximumf %52, %45 : vector<8x512xf32>
    %54 = arith.maximumf %53, %46 : vector<8x512xf32>
    %55 = arith.truncf %54 : vector<8x512xf32> to vector<8x512xbf16>
    %c0_19 = arith.constant 0 : index
    %c0_20 = arith.constant 0 : index
    %56 = vector.load %arg1[%c0_19, %c0_20] : memref<512x128xbf16, #tpu.memory_space<vmem>>, vector<512x128xbf16>
    %cst_21 = arith.constant dense<0.000000e+00> : vector<8x128xf32>
    %57 = tpu.matmul %55, %56, %cst_21 {dimension_numbers = #tpu.dot_dimension_numbers<[1], [0], [0], [1], [0, 0, 1, 1], [], []>} : vector<8x512xbf16>, vector<512x128xbf16>, vector<8x128xf32> -> vector<8x128xf32>
    %c0_22 = arith.constant 0 : index
    %c0_23 = arith.constant 0 : index
    %58 = vector.load %arg3[%c0_22, %c0_23] : memref<8x8xbf16, #tpu.memory_space<vmem>>, vector<8x8xbf16>
    %59 = arith.truncf %57 : vector<8x128xf32> to vector<8x128xbf16>
    %cst_24 = arith.constant dense<0.000000e+00> : vector<8x128xf32>
    %60 = tpu.matmul %58, %59, %cst_24 {dimension_numbers = #tpu.dot_dimension_numbers<[1], [0], [0], [1], [0, 0, 1, 1], [], []>} : vector<8x8xbf16>, vector<8x128xbf16>, vector<8x128xf32> -> vector<8x128xf32>
    %c0_25 = arith.constant 0 : index
    %c3 = arith.constant 3 : index
    %61 = vector.load %arg6[%c0_25, %c3] : memref<8x12xf32, #tpu.memory_space<vmem>>, vector<8x1xf32>
    %c0_26 = arith.constant 0 : index
    %c4 = arith.constant 4 : index
    %62 = vector.load %arg6[%c0_26, %c4] : memref<8x12xf32, #tpu.memory_space<vmem>>, vector<8x1xf32>
    %c0_27 = arith.constant 0 : index
    %c5 = arith.constant 5 : index
    %63 = vector.load %arg6[%c0_27, %c5] : memref<8x12xf32, #tpu.memory_space<vmem>>, vector<8x1xf32>
    %64 = vector.broadcast %61 : vector<8x1xf32> to vector<8x128xf32>
    %65 = arith.addf %60, %64 : vector<8x128xf32>
    %cst_28 = arith.constant 0.000000e+00 : f32
    %66 = vector.broadcast %cst_28 : f32 to vector<8x128xf32>
    %67 = arith.maximumf %65, %66 : vector<8x128xf32>
    %68 = vector.broadcast %1 : vector<1x128xf32> to vector<8x128xf32>
    %69 = arith.mulf %67, %68 : vector<8x128xf32>
    %cst_29 = arith.constant dense<0.000000e+00> : vector<8xf32>
    %70 = vector.multi_reduction <add>, %69, %cst_29 [1] : vector<8x128xf32> to vector<8xf32>
    %71 = vector.shape_cast %70 : vector<8xf32> to vector<8x1xf32>
    %cst_30 = arith.constant 0.0102040814 : f32
    %72 = vector.broadcast %cst_30 : f32 to vector<8x1xf32>
    %73 = arith.mulf %71, %72 : vector<8x1xf32>
    %74 = vector.broadcast %73 : vector<8x1xf32> to vector<8x128xf32>
    %75 = arith.subf %67, %74 : vector<8x128xf32>
    %76 = vector.broadcast %1 : vector<1x128xf32> to vector<8x128xf32>
    %77 = arith.mulf %75, %76 : vector<8x128xf32>
    %78 = arith.mulf %77, %77 : vector<8x128xf32>
    %cst_31 = arith.constant dense<0.000000e+00> : vector<8xf32>
    %79 = vector.multi_reduction <add>, %78, %cst_31 [1] : vector<8x128xf32> to vector<8xf32>
    %80 = vector.shape_cast %79 : vector<8xf32> to vector<8x1xf32>
    %cst_32 = arith.constant 0.0102040814 : f32
    %81 = vector.broadcast %cst_32 : f32 to vector<8x1xf32>
    %82 = arith.mulf %80, %81 : vector<8x1xf32>
    %83 = vector.broadcast %73 : vector<8x1xf32> to vector<8x128xf32>
    %84 = arith.subf %67, %83 : vector<8x128xf32>
    %cst_33 = arith.constant 9.99999974E-6 : f32
    %85 = vector.broadcast %cst_33 : f32 to vector<8x1xf32>
    %86 = arith.addf %82, %85 : vector<8x1xf32>
    %87 = math.rsqrt %86 : vector<8x1xf32>
    %88 = vector.broadcast %87 : vector<8x1xf32> to vector<8x128xf32>
    %89 = arith.mulf %84, %88 : vector<8x128xf32>
    %90 = vector.broadcast %62 : vector<8x1xf32> to vector<8x128xf32>
    %91 = arith.mulf %89, %90 : vector<8x128xf32>
    %92 = vector.broadcast %63 : vector<8x1xf32> to vector<8x128xf32>
    %93 = arith.addf %91, %92 : vector<8x128xf32>
    %c127_i32 = arith.constant 127 : i32
    %94 = tpu.dynamic_rotate %93 by %c127_i32 dim 1 : vector<8x128xf32>, i32 -> vector<8x128xf32>
    %c126_i32 = arith.constant 126 : i32
    %95 = tpu.dynamic_rotate %93 by %c126_i32 dim 1 : vector<8x128xf32>, i32 -> vector<8x128xf32>
    %c121_i32 = arith.constant 121 : i32
    %96 = tpu.dynamic_rotate %93 by %c121_i32 dim 1 : vector<8x128xf32>, i32 -> vector<8x128xf32>
    %c120_i32 = arith.constant 120 : i32
    %97 = tpu.dynamic_rotate %93 by %c120_i32 dim 1 : vector<8x128xf32>, i32 -> vector<8x128xf32>
    %c119_i32 = arith.constant 119 : i32
    %98 = tpu.dynamic_rotate %93 by %c119_i32 dim 1 : vector<8x128xf32>, i32 -> vector<8x128xf32>
    %c114_i32 = arith.constant 114 : i32
    %99 = tpu.dynamic_rotate %93 by %c114_i32 dim 1 : vector<8x128xf32>, i32 -> vector<8x128xf32>
    %c113_i32 = arith.constant 113 : i32
    %100 = tpu.dynamic_rotate %93 by %c113_i32 dim 1 : vector<8x128xf32>, i32 -> vector<8x128xf32>
    %c112_i32 = arith.constant 112 : i32
    %101 = tpu.dynamic_rotate %93 by %c112_i32 dim 1 : vector<8x128xf32>, i32 -> vector<8x128xf32>
    %102 = tpu.concatenate %93, %94, %95, %96, %97, %98, %99, %100, %101 in 0 : vector<8x128xf32>, vector<8x128xf32>, vector<8x128xf32>, vector<8x128xf32>, vector<8x128xf32>, vector<8x128xf32>, vector<8x128xf32>, vector<8x128xf32>, vector<8x128xf32> -> vector<72x128xf32>
    %103 = arith.truncf %102 : vector<72x128xf32> to vector<72x128xbf16>
    %c0_34 = arith.constant 0 : index
    %c0_35 = arith.constant 0 : index
    %104 = vector.load %arg4[%c0_34, %c0_35] : memref<8x72xbf16, #tpu.memory_space<vmem>>, vector<8x72xbf16>
    %cst_36 = arith.constant dense<0.000000e+00> : vector<8x128xf32>
    %105 = tpu.matmul %104, %103, %cst_36 {dimension_numbers = #tpu.dot_dimension_numbers<[1], [0], [0], [1], [0, 0, 1, 1], [], []>} : vector<8x72xbf16>, vector<72x128xbf16>, vector<8x128xf32> -> vector<8x128xf32>
    %c0_37 = arith.constant 0 : index
    %c6 = arith.constant 6 : index
    %106 = vector.load %arg6[%c0_37, %c6] : memref<8x12xf32, #tpu.memory_space<vmem>>, vector<8x1xf32>
    %c0_38 = arith.constant 0 : index
    %c7 = arith.constant 7 : index
    %107 = vector.load %arg6[%c0_38, %c7] : memref<8x12xf32, #tpu.memory_space<vmem>>, vector<8x1xf32>
    %c0_39 = arith.constant 0 : index
    %c8 = arith.constant 8 : index
    %108 = vector.load %arg6[%c0_39, %c8] : memref<8x12xf32, #tpu.memory_space<vmem>>, vector<8x1xf32>
    %109 = vector.broadcast %106 : vector<8x1xf32> to vector<8x128xf32>
    %110 = arith.addf %105, %109 : vector<8x128xf32>
    %cst_40 = arith.constant 0.000000e+00 : f32
    %111 = vector.broadcast %cst_40 : f32 to vector<8x128xf32>
    %112 = arith.maximumf %110, %111 : vector<8x128xf32>
    %113 = vector.broadcast %2 : vector<1x128xf32> to vector<8x128xf32>
    %114 = arith.mulf %112, %113 : vector<8x128xf32>
    %cst_41 = arith.constant dense<0.000000e+00> : vector<8xf32>
    %115 = vector.multi_reduction <add>, %114, %cst_41 [1] : vector<8x128xf32> to vector<8xf32>
    %116 = vector.shape_cast %115 : vector<8xf32> to vector<8x1xf32>
    %cst_42 = arith.constant 2.000000e-02 : f32
    %117 = vector.broadcast %cst_42 : f32 to vector<8x1xf32>
    %118 = arith.mulf %116, %117 : vector<8x1xf32>
    %119 = vector.broadcast %118 : vector<8x1xf32> to vector<8x128xf32>
    %120 = arith.subf %112, %119 : vector<8x128xf32>
    %121 = vector.broadcast %2 : vector<1x128xf32> to vector<8x128xf32>
    %122 = arith.mulf %120, %121 : vector<8x128xf32>
    %123 = arith.mulf %122, %122 : vector<8x128xf32>
    %cst_43 = arith.constant dense<0.000000e+00> : vector<8xf32>
    %124 = vector.multi_reduction <add>, %123, %cst_43 [1] : vector<8x128xf32> to vector<8xf32>
    %125 = vector.shape_cast %124 : vector<8xf32> to vector<8x1xf32>
    %cst_44 = arith.constant 2.000000e-02 : f32
    %126 = vector.broadcast %cst_44 : f32 to vector<8x1xf32>
    %127 = arith.mulf %125, %126 : vector<8x1xf32>
    %128 = vector.broadcast %118 : vector<8x1xf32> to vector<8x128xf32>
    %129 = arith.subf %112, %128 : vector<8x128xf32>
    %cst_45 = arith.constant 9.99999974E-6 : f32
    %130 = vector.broadcast %cst_45 : f32 to vector<8x1xf32>
    %131 = arith.addf %127, %130 : vector<8x1xf32>
    %132 = math.rsqrt %131 : vector<8x1xf32>
    %133 = vector.broadcast %132 : vector<8x1xf32> to vector<8x128xf32>
    %134 = arith.mulf %129, %133 : vector<8x128xf32>
    %135 = vector.broadcast %107 : vector<8x1xf32> to vector<8x128xf32>
    %136 = arith.mulf %134, %135 : vector<8x128xf32>
    %137 = vector.broadcast %108 : vector<8x1xf32> to vector<8x128xf32>
    %138 = arith.addf %136, %137 : vector<8x128xf32>
    %c0_46 = arith.constant 0 : index
    %c0_47 = arith.constant 0 : index
    %139 = vector.load %arg5[%c0_46, %c0_47] : memref<8x8xbf16, #tpu.memory_space<vmem>>, vector<8x8xbf16>
    %140 = arith.truncf %138 : vector<8x128xf32> to vector<8x128xbf16>
    %cst_48 = arith.constant dense<0.000000e+00> : vector<8x128xf32>
    %141 = tpu.matmul %139, %140, %cst_48 {dimension_numbers = #tpu.dot_dimension_numbers<[1], [0], [0], [1], [0, 0, 1, 1], [], []>} : vector<8x8xbf16>, vector<8x128xbf16>, vector<8x128xf32> -> vector<8x128xf32>
    %c0_49 = arith.constant 0 : index
    %c9 = arith.constant 9 : index
    %142 = vector.load %arg6[%c0_49, %c9] : memref<8x12xf32, #tpu.memory_space<vmem>>, vector<8x1xf32>
    %c0_50 = arith.constant 0 : index
    %c10 = arith.constant 10 : index
    %143 = vector.load %arg6[%c0_50, %c10] : memref<8x12xf32, #tpu.memory_space<vmem>>, vector<8x1xf32>
    %c0_51 = arith.constant 0 : index
    %c11 = arith.constant 11 : index
    %144 = vector.load %arg6[%c0_51, %c11] : memref<8x12xf32, #tpu.memory_space<vmem>>, vector<8x1xf32>
    %145 = vector.broadcast %142 : vector<8x1xf32> to vector<8x128xf32>
    %146 = arith.addf %141, %145 : vector<8x128xf32>
    %cst_52 = arith.constant 0.000000e+00 : f32
    %147 = vector.broadcast %cst_52 : f32 to vector<8x128xf32>
    %148 = arith.maximumf %146, %147 : vector<8x128xf32>
    %149 = vector.broadcast %2 : vector<1x128xf32> to vector<8x128xf32>
    %150 = arith.mulf %148, %149 : vector<8x128xf32>
    %cst_53 = arith.constant dense<0.000000e+00> : vector<8xf32>
    %151 = vector.multi_reduction <add>, %150, %cst_53 [1] : vector<8x128xf32> to vector<8xf32>
    %152 = vector.shape_cast %151 : vector<8xf32> to vector<8x1xf32>
    %cst_54 = arith.constant 2.000000e-02 : f32
    %153 = vector.broadcast %cst_54 : f32 to vector<8x1xf32>
    %154 = arith.mulf %152, %153 : vector<8x1xf32>
    %155 = vector.broadcast %154 : vector<8x1xf32> to vector<8x128xf32>
    %156 = arith.subf %148, %155 : vector<8x128xf32>
    %157 = vector.broadcast %2 : vector<1x128xf32> to vector<8x128xf32>
    %158 = arith.mulf %156, %157 : vector<8x128xf32>
    %159 = arith.mulf %158, %158 : vector<8x128xf32>
    %cst_55 = arith.constant dense<0.000000e+00> : vector<8xf32>
    %160 = vector.multi_reduction <add>, %159, %cst_55 [1] : vector<8x128xf32> to vector<8xf32>
    %161 = vector.shape_cast %160 : vector<8xf32> to vector<8x1xf32>
    %cst_56 = arith.constant 2.000000e-02 : f32
    %162 = vector.broadcast %cst_56 : f32 to vector<8x1xf32>
    %163 = arith.mulf %161, %162 : vector<8x1xf32>
    %164 = vector.broadcast %154 : vector<8x1xf32> to vector<8x128xf32>
    %165 = arith.subf %148, %164 : vector<8x128xf32>
    %cst_57 = arith.constant 9.99999974E-6 : f32
    %166 = vector.broadcast %cst_57 : f32 to vector<8x1xf32>
    %167 = arith.addf %163, %166 : vector<8x1xf32>
    %168 = math.rsqrt %167 : vector<8x1xf32>
    %169 = vector.broadcast %168 : vector<8x1xf32> to vector<8x128xf32>
    %170 = arith.mulf %165, %169 : vector<8x128xf32>
    %171 = vector.broadcast %143 : vector<8x1xf32> to vector<8x128xf32>
    %172 = arith.mulf %170, %171 : vector<8x128xf32>
    %173 = vector.broadcast %144 : vector<8x1xf32> to vector<8x128xf32>
    %174 = arith.addf %172, %173 : vector<8x128xf32>
    %c0_58 = arith.constant 0 : index
    %c0_59 = arith.constant 0 : index
    %175 = vector.load %arg9[%c0_58, %c0_59] : memref<8x128xf32, #tpu.memory_space<vmem>>, vector<8x128xf32>
    tpu.vector_store %arg9[%c0_58, %c0_59], %174 {strides = array<i32>} : memref<8x128xf32, #tpu.memory_space<vmem>>, vector<8x128xf32>,
    return
  }
}

</mosaic_0001>

<llo_original>
// kernel: tpu_custom_call.1
$region0: #{tpu_custom_call.1}
  #allocation0 [shape = 'u32[]', space=smem, size = 0x4, offset = 0x4, fixed_abs, tag = 'smem constant byte address 0x4 - core index']
  #allocation1 [shape = 'u32[72,128]{1,0:T(1,128)}', space=vmem, size = 0x9000, scoped, tag = 'internal scratch']
  %s0 = inlined_call_operand.hbm [shape: bf16[36,512], index: 0, kind: input, shape index: {}]
  %s1 = inlined_call_operand.hbm [shape: bf16[512,128], index: 1, kind: input, shape index: {}]
  %s2 = inlined_call_operand.hbm [shape: bf16[8,36], index: 2, kind: input, shape index: {}]
  %s3 = inlined_call_operand.hbm [shape: bf16[8,8], index: 3, kind: input, shape index: {}]
  %s4 = inlined_call_operand.hbm [shape: bf16[8,72], index: 4, kind: input, shape index: {}]
  %s5 = inlined_call_operand.vmem [shape: bf16[8,8], index: 5, kind: input, shape index: {}]
  %s6 = inlined_call_operand.hbm [shape: f32[8,12], index: 6, kind: input, shape index: {}]
  %s7 = inlined_call_operand.hbm [shape: f32[1,512], index: 7, kind: input, shape index: {}]
  %s8 = inlined_call_operand.vmem [shape: f32[2,128], index: 8, kind: input, shape index: {}]
  %s9 = inlined_call_operand.hbm [shape: f32[8,128], index: 9, kind: output, shape index: {}]
  %s10 = sld [smem:[#allocation0]]
  $region74: #{tpu_custom_call.1} parent=0
    _
  %s12 = ssub.s32 1, %s10
  %s13 = scalar_select 0, %s12, %s10
  $region1: #{tpu_custom_call.1} parent=0
    #allocation2 [shape = 'u8[40960]{0}', space=vmem, size = 0xa000, scoped, tag = 'input window, operand 0, single buffered']
    #allocation3 [shape = 's32[1]{0}', space=sflag, size = 0x4, scoped, tag = 'scoped memory for tpu_custom_call.1']
    #allocation4 [shape = 's32[1]{0}', space=sflag, size = 0x4, scoped, tag = 'scoped memory for tpu_custom_call.1']
    #allocation5 [shape = 'u8[131072]{0}', space=vmem, size = 0x20000, scoped, tag = 'input window, operand 1, single buffered']
    #allocation6 [shape = 's32[1]{0}', space=sflag, size = 0x4, scoped, tag = 'scoped memory for tpu_custom_call.1']
    #allocation7 [shape = 'u8[2048]{0}', space=vmem, size = 0x800, scoped, tag = 'input window, operand 2, single buffered']
    #allocation8 [shape = 'u8[2048]{0}', space=vmem, size = 0x800, scoped, tag = 'input window, operand 3, single buffered']
    #allocation9 [shape = 's32[1]{0}', space=sflag, size = 0x4, scoped, tag = 'scoped memory for tpu_custom_call.1']
    #allocation10 [shape = 'u8[2048]{0}', space=vmem, size = 0x800, scoped, tag = 'input window, operand 4, single buffered']
    #allocation11 [shape = 'u8[4096]{0}', space=vmem, size = 0x1000, scoped, tag = 'input window, operand 6, single buffered']
    #allocation12 [shape = 's32[1]{0}', space=sflag, size = 0x4, scoped, tag = 'scoped memory for tpu_custom_call.1']
    #allocation13 [shape = 'u8[2048]{0}', space=vmem, size = 0x800, scoped, tag = 'input window, operand 7, single buffered']
    #allocation14 [shape = 'u8[4096]{0}', space=vmem, size = 0x1000, scoped, tag = 'output window, operand 0, single buffered']
    %14 = vsyncpa [#allocation3], 0
    %15 = vsyncpa [#allocation6], 0
    %16 = vsyncpa [#allocation9], 0
    %17 = vsyncpa [#allocation12], 0
    %18 = vsyncpa [#allocation4], 0
    // Predicated region
    $region2: #{tpu_custom_call.1} parent=1 // pred_check
      _
    $region3: #{tpu_custom_call.1} parent=1 // pred_check_branch
      %20 = sbr.rel (0) target = $region5
    $region4: #{tpu_custom_call.1} parent=1 // pred_region
      %22 = vsyncadd [#allocation3], 0
      %s23 = sshll.u32 %s0, 4
      %s24 = int_to_ptr.hbm [resolvable:$true] %s23
      %s25 = sshll.u32 [#allocation2], 4
      %s26 = int_to_ptr.vmem [resolvable:$true] %s25
      %31 = dma.hbm_to_vmem [thread:$0]  %s24, 1280, %s26, [#allocation3], 256, 256, 16
    $region5: #{tpu_custom_call.1} parent=1 // pred_fallthru
      _
    // Predicated region
    $region6: #{tpu_custom_call.1} parent=1 // pred_check
      _
    $region7: #{tpu_custom_call.1} parent=1 // pred_check_branch
      %33 = sbr.rel (0) target = $region9
    $region8: #{tpu_custom_call.1} parent=1 // pred_region
      %35 = vsyncadd [#allocation6], 0
      %s36 = sshll.u32 %s1, 4
      %s37 = int_to_ptr.hbm [resolvable:$true] %s36
      %s38 = sshll.u32 [#allocation5], 4
      %s39 = int_to_ptr.vmem [resolvable:$true] %s38
      %44 = dma.hbm_to_vmem [thread:$0]  %s37, 4096, %s39, [#allocation6], 64, 64, 4
    $region9: #{tpu_custom_call.1} parent=1 // pred_fallthru
      _
    // Predicated region
    $region10: #{tpu_custom_call.1} parent=1 // pred_check
      _
    $region11: #{tpu_custom_call.1} parent=1 // pred_check_branch
      %46 = sbr.rel (0) target = $region13
    $region12: #{tpu_custom_call.1} parent=1 // pred_region
      %48 = vsyncadd [#allocation6], 0
      %s50 = sshll.u32 %s2, 4
      %s51 = int_to_ptr.hbm [resolvable:$true] %s50
      %s52 = sshll.u32 [#allocation7], 4
      %s53 = int_to_ptr.vmem [resolvable:$true] %s52
      %55 = dma.hbm_to_vmem [thread:$0]  %s51, 64, %s53, [#allocation6]
    $region13: #{tpu_custom_call.1} parent=1 // pred_fallthru
      _
    // Predicated region
    $region14: #{tpu_custom_call.1} parent=1 // pred_check
      _
    $region15: #{tpu_custom_call.1} parent=1 // pred_check_branch
      %57 = sbr.rel (0) target = $region17
    $region16: #{tpu_custom_call.1} parent=1 // pred_region
      %59 = vsyncadd [#allocation9], 0
      %s61 = sshll.u32 %s3, 4
      %s62 = int_to_ptr.hbm [resolvable:$true] %s61
      %s63 = sshll.u32 [#allocation8], 4
      %s64 = int_to_ptr.vmem [resolvable:$true] %s63
      %66 = dma.hbm_to_vmem [thread:$0]  %s62, 64, %s64, [#allocation9]
    $region17: #{tpu_custom_call.1} parent=1 // pred_fallthru
      _
    // Predicated region
    $region18: #{tpu_custom_call.1} parent=1 // pred_check
      _
    $region19: #{tpu_custom_call.1} parent=1 // pred_check_branch
      %68 = sbr.rel (0) target = $region21
    $region20: #{tpu_custom_call.1} parent=1 // pred_region
      %70 = vsyncadd [#allocation9], 0
      %s72 = sshll.u32 %s4, 4
      %s73 = int_to_ptr.hbm [resolvable:$true] %s72
      %s74 = sshll.u32 [#allocation10], 4
      %s75 = int_to_ptr.vmem [resolvable:$true] %s74
      %77 = dma.hbm_to_vmem [thread:$0]  %s73, 64, %s75, [#allocation9]
    $region21: #{tpu_custom_call.1} parent=1 // pred_fallthru
      _
    // Predicated region
    $region22: #{tpu_custom_call.1} parent=1 // pred_check
      _
    $region23: #{tpu_custom_call.1} parent=1 // pred_check_branch
      %79 = sbr.rel (0) target = $region25
    $region24: #{tpu_custom_call.1} parent=1 // pred_region
      _
    $region25: #{tpu_custom_call.1} parent=1 // pred_fallthru
      _
    // Predicated region
    $region26: #{tpu_custom_call.1} parent=1 // pred_check
      _
    $region27: #{tpu_custom_call.1} parent=1 // pred_check_branch
      %81 = sbr.rel (0) target = $region29
    $region28: #{tpu_custom_call.1} parent=1 // pred_region
      %83 = vsyncadd [#allocation12], 0
      %s85 = sshll.u32 %s6, 4
      %s86 = int_to_ptr.hbm [resolvable:$true] %s85
      %s87 = sshll.u32 [#allocation11], 4
      %s88 = int_to_ptr.vmem [resolvable:$true] %s87
      %90 = dma.hbm_to_vmem [thread:$0]  %s86, 128, %s88, [#allocation12]
    $region29: #{tpu_custom_call.1} parent=1 // pred_fallthru
      _
    // Predicated region
    $region30: #{tpu_custom_call.1} parent=1 // pred_check
      _
    $region31: #{tpu_custom_call.1} parent=1 // pred_check_branch
      %92 = sbr.rel (0) target = $region33
    $region32: #{tpu_custom_call.1} parent=1 // pred_region
      %94 = vsyncadd [#allocation12], 0
      %s96 = sshll.u32 %s7, 4
      %s97 = int_to_ptr.hbm [resolvable:$true] %s96
      %s98 = sshll.u32 [#allocation13], 4
      %s99 = int_to_ptr.vmem [resolvable:$true] %s98
      %101 = dma.hbm_to_vmem [thread:$0]  %s97, 64, %s99, [#allocation12]
    $region33: #{tpu_custom_call.1} parent=1 // pred_fallthru
      _
    // Predicated region
    $region34: #{tpu_custom_call.1} parent=1 // pred_check
      _
    $region35: #{tpu_custom_call.1} parent=1 // pred_check_branch
      %103 = sbr.rel (0) target = $region37
    $region36: #{tpu_custom_call.1} parent=1 // pred_region
      _
    $region37: #{tpu_custom_call.1} parent=1 // pred_fallthru
      _
    // Predicated region
    $region38: #{tpu_custom_call.1} parent=1 // pred_check
      _
    $region39: #{tpu_custom_call.1} parent=1 // pred_check_branch
      %105 = sbr.rel (0) target = $region41
    $region40: #{tpu_custom_call.1} parent=1 // pred_region
      %107 = dma.done [#allocation3], 1280
    $region41: #{tpu_custom_call.1} parent=1 // pred_fallthru
      _
    // Predicated region
    $region42: #{tpu_custom_call.1} parent=1 // pred_check
      _
    $region43: #{tpu_custom_call.1} parent=1 // pred_check_branch
      %109 = sbr.rel (0) target = $region45
    $region44: #{tpu_custom_call.1} parent=1 // pred_region
      %111 = dma.done [#allocation6], 4096
    $region45: #{tpu_custom_call.1} parent=1 // pred_fallthru
      _
    // Predicated region
    $region46: #{tpu_custom_call.1} parent=1 // pred_check
      _
    $region47: #{tpu_custom_call.1} parent=1 // pred_check_branch
      %113 = sbr.rel (0) target = $region49
    $region48: #{tpu_custom_call.1} parent=1 // pred_region
      %115 = dma.done [#allocation6], 64
    $region49: #{tpu_custom_call.1} parent=1 // pred_fallthru
      _
    // Predicated region
    $region50: #{tpu_custom_call.1} parent=1 // pred_check
      _
    $region51: #{tpu_custom_call.1} parent=1 // pred_check_branch
      %117 = sbr.rel (0) target = $region53
    $region52: #{tpu_custom_call.1} parent=1 // pred_region
      %119 = dma.done [#allocation9], 64
    $region53: #{tpu_custom_call.1} parent=1 // pred_fallthru
      _
    // Predicated region
    $region54: #{tpu_custom_call.1} parent=1 // pred_check
      _
    $region55: #{tpu_custom_call.1} parent=1 // pred_check_branch
      %121 = sbr.rel (0) target = $region57
    $region56: #{tpu_custom_call.1} parent=1 // pred_region
      %123 = dma.done [#allocation9], 64
    $region57: #{tpu_custom_call.1} parent=1 // pred_fallthru
      _
    // Predicated region
    $region58: #{tpu_custom_call.1} parent=1 // pred_check
      _
    $region59: #{tpu_custom_call.1} parent=1 // pred_check_branch
      %125 = sbr.rel (0) target = $region61
    $region60: #{tpu_custom_call.1} parent=1 // pred_region
      %127 = dma.done [#allocation12], 128
    $region61: #{tpu_custom_call.1} parent=1 // pred_fallthru
      _
    // Predicated region
    $region62: #{tpu_custom_call.1} parent=1 // pred_check
      _
    $region63: #{tpu_custom_call.1} parent=1 // pred_check_branch
      %129 = sbr.rel (0) target = $region65
    $region64: #{tpu_custom_call.1} parent=1 // pred_region
      %131 = dma.done [#allocation12], 64
    $region65: #{tpu_custom_call.1} parent=1 // pred_fallthru
      _
    %v133 = vld [vmem:[#allocation13] sm:$0xf]
    %v134 = vld [vmem:[%s8] sm:$0x1]
    %v135 = vld [vmem:[%s8 + $0x1] sm:$0x1]
    %v136 = vld [vmem:[#allocation7] sm:$0xf]
    %v137 = vld [vmem:[#allocation2] sm:$0xff]
    %v138 = vld [vmem:[#allocation2 + $0x8] sm:$0xff]
    %v139 = vld [vmem:[#allocation2 + $0x10] sm:$0xff]
    %v140 = vld [vmem:[#allocation2 + $0x18] sm:$0xff]
    %v141 = vld [vmem:[#allocation2 + $0x20] sm:$0xff]
    %v142 = vld [vmem:[#allocation2 + $0x28] sm:$0xff]
    %v143 = vld [vmem:[#allocation2 + $0x30] sm:$0xff]
    %v144 = vld [vmem:[#allocation2 + $0x38] sm:$0xff]
    %v145 = vld [vmem:[#allocation2 + $0x40] sm:$0x33]
    %v146 = vld [vmem:[#allocation2 + $0x48] sm:$0x33]
    %v147 = vld [vmem:[#allocation11] sm:$0xff]
    %149 = vset.pattern.permute.xlu0 0
    %150 = vperm.xlu0 %149, %v147
    %v151 = vpop.permute.xlu0 %150
    %v163 = vunpack.c.l.b16 %v137
    %v164 = vunpack.c.h.b16 %v137
    %v165 = vunpack.c.l.b16 %v138
    %v166 = vunpack.c.h.b16 %v138
    %v167 = vunpack.c.l.b16 %v139
    %v168 = vunpack.c.h.b16 %v139
    %v169 = vunpack.c.l.b16 %v140
    %v170 = vunpack.c.h.b16 %v140
    %v171 = vunpack.c.l.b16 %v141
    %v172 = vunpack.c.h.b16 %v141
    %v173 = vunpack.c.l.b16 %v142
    %v174 = vunpack.c.h.b16 %v142
    %v175 = vunpack.c.l.b16 %v143
    %v176 = vunpack.c.h.b16 %v143
    %v177 = vunpack.c.l.b16 %v144
    %v178 = vunpack.c.h.b16 %v144
    %v179 = vunpack.c.l.b16 %v145
    %v180 = vunpack.c.h.b16 %v145
    %v181 = vunpack.c.l.b16 %v146
    %v182 = vunpack.c.h.b16 %v146
    %v183 = vpack.c.b16 %v167, %v163
    %v184 = vpack.c.b16 %v168, %v164
    %v185 = vpack.c.b16 %v169, %v165
    %v186 = vpack.c.b16 %v170, %v166
    %v187 = vpack.c.b16 %v175, %v171
    %v188 = vpack.c.b16 %v176, %v172
    %v189 = vpack.c.b16 %v177, %v173
    %v190 = vpack.c.b16 %v178, %v174
    %v191 = vpack.c.b16 %v179, %v179
    %v192 = vpack.c.b16 %v180, %v180
    %v193 = vpack.c.b16 %v181, %v181
    %v194 = vpack.c.b16 %v182, %v182
    %vm203 = vcmask 293888
    %v205 = vsel %vm203, %v136, 0
    %vm207 = vcmask 1041408
    %v209 = vsel %vm207, %v191, 0
    %v212 = vsel %vm207, %v192, 0
    %v215 = vsel %vm207, %v193, 0
    %v218 = vsel %vm207, %v194, 0
    %220 = vmatpush.bf16.msra.mxu0 0
    %221 = vmatpush.bf16.msra.mxu0 0
    %222 = vmatpush.bf16.msra.mxu0 0
    %223 = vmatpush.bf16.msra.mxu0 0
    %224 = vmatpush.bf16.msra.mxu0 0
    %225 = vmatpush.bf16.msra.mxu0 %v209
    %226 = vmatpush.bf16.msra.mxu0 %v187
    %227 = vmatpush.bf16.msra.mxu0 %v183
    %228 = vmatmul.bf16.gmra.mxu0 %v205
    %v229 = vpop.f32.mrf.mxu0
    %v230 = vadd.f32 %v151, %v229
    %v231 = vpop.f32.mrf.mxu0
    %232 = vdwg.mxu0
    %233 = vmatpush.bf16.msra.mxu0 0
    %234 = vmatpush.bf16.msra.mxu0 0
    %235 = vmatpush.bf16.msra.mxu0 0
    %236 = vmatpush.bf16.msra.mxu0 0
    %237 = vmatpush.bf16.msra.mxu0 0
    %238 = vmatpush.bf16.msra.mxu0 %v212
    %239 = vmatpush.bf16.msra.mxu0 %v188
    %240 = vmatpush.bf16.msra.mxu0 %v184
    %241 = vmatmul.bf16.gmra.mxu0 %v205
    %v242 = vpop.f32.mrf.mxu0
    %v243 = vadd.f32 %v151, %v242
    %v244 = vpop.f32.mrf.mxu0
    %245 = vdwg.mxu0
    %246 = vmatpush.bf16.msra.mxu0 0
    %247 = vmatpush.bf16.msra.mxu0 0
    %248 = vmatpush.bf16.msra.mxu0 0
    %249 = vmatpush.bf16.msra.mxu0 0
    %250 = vmatpush.bf16.msra.mxu0 0
    %251 = vmatpush.bf16.msra.mxu0 %v215
    %252 = vmatpush.bf16.msra.mxu0 %v189
    %253 = vmatpush.bf16.msra.mxu0 %v185
    %254 = vmatmul.bf16.gmra.mxu0 %v205
    %v255 = vpop.f32.mrf.mxu0
    %v256 = vadd.f32 %v151, %v255
    %v257 = vpop.f32.mrf.mxu0
    %258 = vdwg.mxu0
    %259 = vmatpush.bf16.msra.mxu0 0
    %260 = vmatpush.bf16.msra.mxu0 0
    %261 = vmatpush.bf16.msra.mxu0 0
    %262 = vmatpush.bf16.msra.mxu0 0
    %263 = vmatpush.bf16.msra.mxu0 0
    %264 = vmatpush.bf16.msra.mxu0 %v218
    %265 = vmatpush.bf16.msra.mxu0 %v190
    %266 = vmatpush.bf16.msra.mxu0 %v186
    %267 = vmatmul.bf16.gmra.mxu0 %v205
    %v268 = vpop.f32.mrf.mxu0
    %v269 = vadd.f32 %v151, %v268
    %v270 = vpop.f32.mrf.mxu0
    %271 = vdwg.mxu0
    %v272 = vmax.f32 %v230, 0.0
    %v273 = vmax.f32 %v243, 0.0
    %v274 = vmax.f32 %v256, 0.0
    %v275 = vmax.f32 %v269, 0.0
    %v277 = vperm.slane %v133, 0
    %v278 = vperm.slane %v133, 1
    %v279 = vperm.slane %v133, 2
    %v280 = vperm.slane %v133, 3
    %v285 = vmul.f32 %v272, %v277
    %v286 = vmul.f32 %v273, %v278
    %v287 = vmul.f32 %v274, %v279
    %v288 = vmul.f32 %v275, %v280
    %v289 = vadd.f32 %v285, %v286
    %v290 = vadd.f32 %v289, %v287
    %v291 = vadd.f32 %v290, %v288
    %292 = vadd.xlane.f32.xlu0 %v291
    %v293 = vpop.xlane.xlu0 %292
    %v294 = vmul.f32 %v293, 0.001953125
    %v295 = vsub.f32 %v272, %v294
    %v296 = vsub.f32 %v273, %v294
    %v297 = vsub.f32 %v274, %v294
    %v298 = vsub.f32 %v275, %v294
    %v299 = vmul.f32 %v295, %v277
    %v300 = vmul.f32 %v296, %v278
    %v301 = vmul.f32 %v297, %v279
    %v302 = vmul.f32 %v298, %v280
    %v303 = vmul.f32 %v299, %v299
    %v304 = vmul.f32 %v300, %v300
    %v305 = vmul.f32 %v301, %v301
    %v306 = vmul.f32 %v302, %v302
    %v307 = vadd.f32 %v303, %v304
    %v308 = vadd.f32 %v307, %v305
    %v309 = vadd.f32 %v308, %v306
    %310 = vadd.xlane.f32.xlu0 %v309
    %v311 = vpop.xlane.xlu0 %310
    %v312 = vmul.f32 %v311, 0.001953125
    %v313 = vadd.f32 %v312, 1e-05
    %v314 = vrsqrt.pop %v313
    %v315 = vmul.f32 %v314, %v313
    %v316 = vmul.f32 %v315, %v314
    %v317 = vmul.f32 0.5, %v316
    %v318 = vsub.f32 1.5, %v317
    %v319 = vmul.f32 %v314, %v318
    %vm320 = vweird.f32 %v313
    %vm321 = vweird.f32 %v314
    %vm322 = vmor %vm320, %vm321
    %v323 = vsel %vm322, %v314, %v319
    %v324 = vmul.f32 %v295, %v323
    %v325 = vmul.f32 %v296, %v323
    %v326 = vmul.f32 %v297, %v323
    %v327 = vmul.f32 %v298, %v323
    %328 = vset.pattern.permute.xlu0 1
    %329 = vperm.xlu0 %328, %v147
    %v330 = vpop.permute.xlu0 %329
    %v332 = vmul.f32 %v324, %v330
    %v333 = vmul.f32 %v325, %v330
    %v334 = vmul.f32 %v326, %v330
    %v335 = vmul.f32 %v327, %v330
    %336 = vset.pattern.permute.xlu0 2
    %337 = vperm.xlu0 %336, %v147
    %v338 = vpop.permute.xlu0 %337
    %v340 = vadd.f32 %v332, %v338
    %v341 = vadd.f32 %v333, %v338
    %v342 = vadd.f32 %v334, %v338
    %v343 = vadd.f32 %v335, %v338
    %344 = vrot.lane.b32.xlu0 %v340, 127
    %v345 = vpop.permute.xlu0 %344
    %346 = vrot.lane.b32.xlu0 %v341, 127
    %v347 = vpop.permute.xlu0 %346
    %348 = vrot.lane.b32.xlu0 %v342, 127
    %v349 = vpop.permute.xlu0 %348
    %350 = vrot.lane.b32.xlu0 %v343, 127
    %v351 = vpop.permute.xlu0 %350
    %v352 = vlaneseq
    %v353 = vand.u32 %v352, 127
    %vm354 = vcmp.lt.s32.totalorder %v353, 127
    %v355 = vsel %vm354, %v349, %v351
    %v356 = vsel %vm354, %v347, %v349
    %v357 = vsel %vm354, %v345, %v347
    %v358 = vsel %vm354, %v351, %v345
    %359 = vrot.lane.b32.xlu0 %v340, 126
    %v360 = vpop.permute.xlu0 %359
    %361 = vrot.lane.b32.xlu0 %v341, 126
    %v362 = vpop.permute.xlu0 %361
    %363 = vrot.lane.b32.xlu0 %v342, 126
    %v364 = vpop.permute.xlu0 %363
    %365 = vrot.lane.b32.xlu0 %v343, 126
    %v366 = vpop.permute.xlu0 %365
    %vm367 = vcmp.lt.s32.totalorder %v353, 126
    %v368 = vsel %vm367, %v364, %v366
    %v369 = vsel %vm367, %v362, %v364
    %v370 = vsel %vm367, %v360, %v362
    %v371 = vsel %vm367, %v366, %v360
    %372 = vrot.lane.b32.xlu0 %v340, 112
    %v373 = vpop.permute.xlu0 %372
    %374 = vrot.lane.b32.xlu0 %v341, 112
    %v375 = vpop.permute.xlu0 %374
    %376 = vrot.lane.b32.xlu0 %v342, 112
    %v377 = vpop.permute.xlu0 %376
    %378 = vrot.lane.b32.xlu0 %v343, 112
    %v379 = vpop.permute.xlu0 %378
    %vm380 = vcmp.lt.s32.totalorder %v353, 112
    %v381 = vsel %vm380, %v377, %v379
    %v382 = vsel %vm380, %v375, %v377
    %v383 = vsel %vm380, %v373, %v375
    %v384 = vsel %vm380, %v379, %v373
    %385 = vrot.lane.b32.xlu0 %v340, 111
    %v386 = vpop.permute.xlu0 %385
    %387 = vrot.lane.b32.xlu0 %v341, 111
    %v388 = vpop.permute.xlu0 %387
    %389 = vrot.lane.b32.xlu0 %v342, 111
    %v390 = vpop.permute.xlu0 %389
    %391 = vrot.lane.b32.xlu0 %v343, 111
    %v392 = vpop.permute.xlu0 %391
    %vm393 = vcmp.lt.s32.totalorder %v353, 111
    %v394 = vsel %vm393, %v390, %v392
    %v395 = vsel %vm393, %v388, %v390
    %v396 = vsel %vm393, %v386, %v388
    %v397 = vsel %vm393, %v392, %v386
    %398 = vrot.lane.b32.xlu0 %v340, 110
    %v399 = vpop.permute.xlu0 %398
    %400 = vrot.lane.b32.xlu0 %v341, 110
    %v401 = vpop.permute.xlu0 %400
    %402 = vrot.lane.b32.xlu0 %v342, 110
    %v403 = vpop.permute.xlu0 %402
    %404 = vrot.lane.b32.xlu0 %v343, 110
    %v405 = vpop.permute.xlu0 %404
    %vm406 = vcmp.lt.s32.totalorder %v353, 110
    %v407 = vsel %vm406, %v403, %v405
    %v408 = vsel %vm406, %v401, %v403
    %v409 = vsel %vm406, %v399, %v401
    %v410 = vsel %vm406, %v405, %v399
    %411 = vrot.lane.b32.xlu0 %v340, 96
    %v412 = vpop.permute.xlu0 %411
    %413 = vrot.lane.b32.xlu0 %v341, 96
    %v414 = vpop.permute.xlu0 %413
    %415 = vrot.lane.b32.xlu0 %v342, 96
    %v416 = vpop.permute.xlu0 %415
    %417 = vrot.lane.b32.xlu0 %v343, 96
    %v418 = vpop.permute.xlu0 %417
    %vm419 = vcmp.lt.s32.totalorder %v353, 96
    %v420 = vsel %vm419, %v416, %v418
    %v421 = vsel %vm419, %v414, %v416
    %v422 = vsel %vm419, %v412, %v414
    %v423 = vsel %vm419, %v418, %v412
    %424 = vrot.lane.b32.xlu0 %v340, 95
    %v425 = vpop.permute.xlu0 %424
    %426 = vrot.lane.b32.xlu0 %v341, 95
    %v427 = vpop.permute.xlu0 %426
    %428 = vrot.lane.b32.xlu0 %v342, 95
    %v429 = vpop.permute.xlu0 %428
    %430 = vrot.lane.b32.xlu0 %v343, 95
    %v431 = vpop.permute.xlu0 %430
    %vm432 = vcmp.lt.s32.totalorder %v353, 95
    %v433 = vsel %vm432, %v429, %v431
    %v434 = vsel %vm432, %v427, %v429
    %v435 = vsel %vm432, %v425, %v427
    %v436 = vsel %vm432, %v431, %v425
    %437 = vrot.lane.b32.xlu0 %v340, 94
    %v438 = vpop.permute.xlu0 %437
    %439 = vrot.lane.b32.xlu0 %v341, 94
    %v440 = vpop.permute.xlu0 %439
    %441 = vrot.lane.b32.xlu0 %v342, 94
    %v442 = vpop.permute.xlu0 %441
    %443 = vrot.lane.b32.xlu0 %v343, 94
    %v444 = vpop.permute.xlu0 %443
    %vm445 = vcmp.lt.s32.totalorder %v353, 94
    %v446 = vsel %vm445, %v442, %v444
    %v447 = vsel %vm445, %v440, %v442
    %v448 = vsel %vm445, %v438, %v440
    %v449 = vsel %vm445, %v444, %v438
    %v450 = vmax.f32 %v340, %v357
    %v451 = vmax.f32 %v341, %v356
    %v452 = vmax.f32 %v342, %v355
    %v453 = vmax.f32 %v343, %v358
    %v454 = vmax.f32 %v450, %v370
    %v455 = vmax.f32 %v451, %v369
    %v456 = vmax.f32 %v452, %v368
    %v457 = vmax.f32 %v453, %v371
    %v458 = vmax.f32 %v454, %v383
    %v459 = vmax.f32 %v455, %v382
    %v460 = vmax.f32 %v456, %v381
    %v461 = vmax.f32 %v457, %v384
    %v462 = vmax.f32 %v458, %v396
    %v463 = vmax.f32 %v459, %v395
    %v464 = vmax.f32 %v460, %v394
    %v465 = vmax.f32 %v461, %v397
    %v466 = vmax.f32 %v462, %v409
    %v467 = vmax.f32 %v463, %v408
    %v468 = vmax.f32 %v464, %v407
    %v469 = vmax.f32 %v465, %v410
    %v470 = vmax.f32 %v466, %v422
    %v471 = vmax.f32 %v467, %v421
    %v472 = vmax.f32 %v468, %v420
    %v473 = vmax.f32 %v469, %v423
    %v474 = vmax.f32 %v470, %v435
    %v475 = vmax.f32 %v471, %v434
    %v476 = vmax.f32 %v472, %v433
    %v477 = vmax.f32 %v473, %v436
    %v478 = vmax.f32 %v474, %v448
    %v479 = vmax.f32 %v475, %v447
    %v480 = vmax.f32 %v476, %v446
    %v481 = vmax.f32 %v477, %v449
    %v482 = vpack.c.bf16 %v478, %v478
    %v483 = vpack.c.bf16 %v479, %v479
    %v484 = vpack.c.bf16 %v480, %v480
    %v485 = vpack.c.bf16 %v481, %v481
    %v486 = vld [vmem:[#allocation5] sm:$0xf]
    %v487 = vld [vmem:[#allocation5 + $0x4] sm:$0xf]
    %v488 = vld [vmem:[#allocation5 + $0x8] sm:$0xf]
    %v489 = vld [vmem:[#allocation5 + $0xc] sm:$0xf]
    %v490 = vld [vmem:[#allocation5 + $0x10] sm:$0xf]
    %v491 = vld [vmem:[#allocation5 + $0x14] sm:$0xf]
    %v492 = vld [vmem:[#allocation5 + $0x18] sm:$0xf]
    %v493 = vld [vmem:[#allocation5 + $0x1c] sm:$0xf]
    %v494 = vld [vmem:[#allocation5 + $0x20] sm:$0xf]
    %v495 = vld [vmem:[#allocation5 + $0x24] sm:$0xf]
    %v496 = vld [vmem:[#allocation5 + $0x28] sm:$0xf]
    %v497 = vld [vmem:[#allocation5 + $0x2c] sm:$0xf]
    %v498 = vld [vmem:[#allocation5 + $0x30] sm:$0xf]
    %v499 = vld [vmem:[#allocation5 + $0x34] sm:$0xf]
    %v500 = vld [vmem:[#allocation5 + $0x38] sm:$0xf]
    %v501 = vld [vmem:[#allocation5 + $0x3c] sm:$0xf]
    %v502 = vld [vmem:[#allocation5 + $0x40] sm:$0xf]
    %v503 = vld [vmem:[#allocation5 + $0x44] sm:$0xf]
    %v504 = vld [vmem:[#allocation5 + $0x48] sm:$0xf]
    %v505 = vld [vmem:[#allocation5 + $0x4c] sm:$0xf]
    %v506 = vld [vmem:[#allocation5 + $0x50] sm:$0xf]
    %v507 = vld [vmem:[#allocation5 + $0x54] sm:$0xf]
    %v508 = vld [vmem:[#allocation5 + $0x58] sm:$0xf]
    %v509 = vld [vmem:[#allocation5 + $0x5c] sm:$0xf]
    %v510 = vld [vmem:[#allocation5 + $0x60] sm:$0xf]
    %v511 = vld [vmem:[#allocation5 + $0x64] sm:$0xf]
    %v512 = vld [vmem:[#allocation5 + $0x68] sm:$0xf]
    %v513 = vld [vmem:[#allocation5 + $0x6c] sm:$0xf]
    %v514 = vld [vmem:[#allocation5 + $0x70] sm:$0xf]
    %v515 = vld [vmem:[#allocation5 + $0x74] sm:$0xf]
    %v516 = vld [vmem:[#allocation5 + $0x78] sm:$0xf]
    %v517 = vld [vmem:[#allocation5 + $0x7c] sm:$0xf]
    %v518 = vld [vmem:[#allocation5 + $0x80] sm:$0xf]
    %v519 = vld [vmem:[#allocation5 + $0x84] sm:$0xf]
    %v520 = vld [vmem:[#allocation5 + $0x88] sm:$0xf]
    %v521 = vld [vmem:[#allocation5 + $0x8c] sm:$0xf]
    %v522 = vld [vmem:[#allocation5 + $0x90] sm:$0xf]
    %v523 = vld [vmem:[#allocation5 + $0x94] sm:$0xf]
    %v524 = vld [vmem:[#allocation5 + $0x98] sm:$0xf]
    %v525 = vld [vmem:[#allocation5 + $0x9c] sm:$0xf]
    %v526 = vld [vmem:[#allocation5 + $0xa0] sm:$0xf]
    %v527 = vld [vmem:[#allocation5 + $0xa4] sm:$0xf]
    %v528 = vld [vmem:[#allocation5 + $0xa8] sm:$0xf]
    %v529 = vld [vmem:[#allocation5 + $0xac] sm:$0xf]
    %v530 = vld [vmem:[#allocation5 + $0xb0] sm:$0xf]
    %v531 = vld [vmem:[#allocation5 + $0xb4] sm:$0xf]
    %v532 = vld [vmem:[#allocation5 + $0xb8] sm:$0xf]
    %v533 = vld [vmem:[#allocation5 + $0xbc] sm:$0xf]
    %v534 = vld [vmem:[#allocation5 + $0xc0] sm:$0xf]
    %v535 = vld [vmem:[#allocation5 + $0xc4] sm:$0xf]
    %v536 = vld [vmem:[#allocation5 + $0xc8] sm:$0xf]
    %v537 = vld [vmem:[#allocation5 + $0xcc] sm:$0xf]
    %v538 = vld [vmem:[#allocation5 + $0xd0] sm:$0xf]
    %v539 = vld [vmem:[#allocation5 + $0xd4] sm:$0xf]
    %v540 = vld [vmem:[#allocation5 + $0xd8] sm:$0xf]
    %v541 = vld [vmem:[#allocation5 + $0xdc] sm:$0xf]
    %v542 = vld [vmem:[#allocation5 + $0xe0] sm:$0xf]
    %v543 = vld [vmem:[#allocation5 + $0xe4] sm:$0xf]
    %v544 = vld [vmem:[#allocation5 + $0xe8] sm:$0xf]
    %v545 = vld [vmem:[#allocation5 + $0xec] sm:$0xf]
    %v546 = vld [vmem:[#allocation5 + $0xf0] sm:$0xf]
    %v547 = vld [vmem:[#allocation5 + $0xf4] sm:$0xf]
    %v548 = vld [vmem:[#allocation5 + $0xf8] sm:$0xf]
    %v549 = vld [vmem:[#allocation5 + $0xfc] sm:$0xf]
    %v614 = vunpack.c.l.b16 %v486
    %v615 = vunpack.c.l.b16 %v487
    %v616 = vunpack.c.l.b16 %v488
    %v617 = vunpack.c.l.b16 %v489
    %v618 = vunpack.c.l.b16 %v490
    %v619 = vunpack.c.l.b16 %v491
    %v620 = vunpack.c.l.b16 %v492
    %v621 = vunpack.c.l.b16 %v493
    %v622 = vunpack.c.l.b16 %v494
    %v623 = vunpack.c.l.b16 %v495
    %v624 = vunpack.c.l.b16 %v496
    %v625 = vunpack.c.l.b16 %v497
    %v626 = vunpack.c.l.b16 %v498
    %v627 = vunpack.c.l.b16 %v499
    %v628 = vunpack.c.l.b16 %v500
    %v629 = vunpack.c.l.b16 %v501
    %v630 = vunpack.c.l.b16 %v502
    %v631 = vunpack.c.l.b16 %v503
    %v632 = vunpack.c.l.b16 %v504
    %v633 = vunpack.c.l.b16 %v505
    %v634 = vunpack.c.l.b16 %v506
    %v635 = vunpack.c.l.b16 %v507
    %v636 = vunpack.c.l.b16 %v508
    %v637 = vunpack.c.l.b16 %v509
    %v638 = vunpack.c.l.b16 %v510
    %v639 = vunpack.c.l.b16 %v511
    %v640 = vunpack.c.l.b16 %v512
    %v641 = vunpack.c.l.b16 %v513
    %v642 = vunpack.c.l.b16 %v514
    %v643 = vunpack.c.l.b16 %v515
    %v644 = vunpack.c.l.b16 %v516
    %v645 = vunpack.c.l.b16 %v517
    %v646 = vunpack.c.l.b16 %v518
    %v647 = vunpack.c.l.b16 %v519
    %v648 = vunpack.c.l.b16 %v520
    %v649 = vunpack.c.l.b16 %v521
    %v650 = vunpack.c.l.b16 %v522
    %v651 = vunpack.c.l.b16 %v523
    %v652 = vunpack.c.l.b16 %v524
    %v653 = vunpack.c.l.b16 %v525
    %v654 = vunpack.c.l.b16 %v526
    %v655 = vunpack.c.l.b16 %v527
    %v656 = vunpack.c.l.b16 %v528
    %v657 = vunpack.c.l.b16 %v529
    %v658 = vunpack.c.l.b16 %v530
    %v659 = vunpack.c.l.b16 %v531
    %v660 = vunpack.c.l.b16 %v532
    %v661 = vunpack.c.l.b16 %v533
    %v662 = vunpack.c.l.b16 %v534
    %v663 = vunpack.c.l.b16 %v535
    %v664 = vunpack.c.l.b16 %v536
    %v665 = vunpack.c.l.b16 %v537
    %v666 = vunpack.c.l.b16 %v538
    %v667 = vunpack.c.l.b16 %v539
    %v668 = vunpack.c.l.b16 %v540
    %v669 = vunpack.c.l.b16 %v541
    %v670 = vunpack.c.l.b16 %v542
    %v671 = vunpack.c.l.b16 %v543
    %v672 = vunpack.c.l.b16 %v544
    %v673 = vunpack.c.l.b16 %v545
    %v674 = vunpack.c.l.b16 %v546
    %v675 = vunpack.c.l.b16 %v547
    %v676 = vunpack.c.l.b16 %v548
    %v677 = vunpack.c.l.b16 %v549
    %v678 = vpack.c.b16 %v615, %v614
    %v679 = vpack.c.b16 %v617, %v616
    %v680 = vpack.c.b16 %v619, %v618
    %v681 = vpack.c.b16 %v621, %v620
    %v682 = vpack.c.b16 %v623, %v622
    %v683 = vpack.c.b16 %v625, %v624
    %v684 = vpack.c.b16 %v627, %v626
    %v685 = vpack.c.b16 %v629, %v628
    %v686 = vpack.c.b16 %v631, %v630
    %v687 = vpack.c.b16 %v633, %v632
    %v688 = vpack.c.b16 %v635, %v634
    %v689 = vpack.c.b16 %v637, %v636
    %v690 = vpack.c.b16 %v639, %v638
    %v691 = vpack.c.b16 %v641, %v640
    %v692 = vpack.c.b16 %v643, %v642
    %v693 = vpack.c.b16 %v645, %v644
    %v694 = vpack.c.b16 %v647, %v646
    %v695 = vpack.c.b16 %v649, %v648
    %v696 = vpack.c.b16 %v651, %v650
    %v697 = vpack.c.b16 %v653, %v652
    %v698 = vpack.c.b16 %v655, %v654
    %v699 = vpack.c.b16 %v657, %v656
    %v700 = vpack.c.b16 %v659, %v658
    %v701 = vpack.c.b16 %v661, %v660
    %v702 = vpack.c.b16 %v663, %v662
    %v703 = vpack.c.b16 %v665, %v664
    %v704 = vpack.c.b16 %v667, %v666
    %v705 = vpack.c.b16 %v669, %v668
    %v706 = vpack.c.b16 %v671, %v670
    %v707 = vpack.c.b16 %v673, %v672
    %v708 = vpack.c.b16 %v675, %v674
    %v709 = vpack.c.b16 %v677, %v676
    %742 = vmatpush.bf16.msra.mxu0 %v685
    %743 = vmatpush.bf16.msra.mxu0 %v684
    %744 = vmatpush.bf16.msra.mxu0 %v683
    %745 = vmatpush.bf16.msra.mxu0 %v682
    %746 = vmatpush.bf16.msra.mxu0 %v681
    %747 = vmatpush.bf16.msra.mxu0 %v680
    %748 = vmatpush.bf16.msra.mxu0 %v679
    %749 = vmatpush.bf16.msra.mxu0 %v678
    %750 = vmatmul.bf16.gmra.mxu0 %v482
    %v751 = vpop.f32.mrf.mxu0
    %v752 = vadd.f32 0.0, %v751
    %v753 = vpop.f32.mrf.mxu0
    %754 = vdwg.mxu0
    %755 = vmatpush.bf16.msra.mxu0 %v693
    %756 = vmatpush.bf16.msra.mxu0 %v692
    %757 = vmatpush.bf16.msra.mxu0 %v691
    %758 = vmatpush.bf16.msra.mxu0 %v690
    %759 = vmatpush.bf16.msra.mxu0 %v689
    %760 = vmatpush.bf16.msra.mxu0 %v688
    %761 = vmatpush.bf16.msra.mxu0 %v687
    %762 = vmatpush.bf16.msra.mxu0 %v686
    %763 = vmatmul.bf16.gmra.mxu0 %v483
    %v764 = vpop.f32.mrf.mxu0
    %v765 = vadd.f32 %v752, %v764
    %v766 = vpop.f32.mrf.mxu0
    %767 = vdwg.mxu0
    %768 = vmatpush.bf16.msra.mxu0 %v701
    %769 = vmatpush.bf16.msra.mxu0 %v700
    %770 = vmatpush.bf16.msra.mxu0 %v699
    %771 = vmatpush.bf16.msra.mxu0 %v698
    %772 = vmatpush.bf16.msra.mxu0 %v697
    %773 = vmatpush.bf16.msra.mxu0 %v696
    %774 = vmatpush.bf16.msra.mxu0 %v695
    %775 = vmatpush.bf16.msra.mxu0 %v694
    %776 = vmatmul.bf16.gmra.mxu0 %v484
    %v777 = vpop.f32.mrf.mxu0
    %v778 = vadd.f32 %v765, %v777
    %v779 = vpop.f32.mrf.mxu0
    %780 = vdwg.mxu0
    %781 = vmatpush.bf16.msra.mxu0 %v709
    %782 = vmatpush.bf16.msra.mxu0 %v708
    %783 = vmatpush.bf16.msra.mxu0 %v707
    %784 = vmatpush.bf16.msra.mxu0 %v706
    %785 = vmatpush.bf16.msra.mxu0 %v705
    %786 = vmatpush.bf16.msra.mxu0 %v704
    %787 = vmatpush.bf16.msra.mxu0 %v703
    %788 = vmatpush.bf16.msra.mxu0 %v702
    %789 = vmatmul.bf16.gmra.mxu0 %v485
    %v790 = vpop.f32.mrf.mxu0
    %v791 = vadd.f32 %v778, %v790
    %v792 = vpop.f32.mrf.mxu0
    %793 = vdwg.mxu0
    %v794 = vld [vmem:[#allocation8] sm:$0xf]
    %v795 = vpack.c.bf16 %v791, %v791
    %796 = vset.pattern.permute.xlu0 3
    %797 = vperm.xlu0 %796, %v147
    %v798 = vpop.permute.xlu0 %797
    %vm800 = vcmask 64512
    %v802 = vsel %vm800, %v794, 0
    %vm804 = vcmask 1043456
    %v806 = vsel %vm804, %v795, 0
    %808 = vmatpush.bf16.msra.mxu0 0
    %809 = vmatpush.bf16.msra.mxu0 0
    %810 = vmatpush.bf16.msra.mxu0 0
    %811 = vmatpush.bf16.msra.mxu0 0
    %812 = vmatpush.bf16.msra.mxu0 0
    %813 = vmatpush.bf16.msra.mxu0 0
    %814 = vmatpush.bf16.msra.mxu0 0
    %815 = vmatpush.bf16.msra.mxu0 %v806
    %816 = vmatmul.bf16.gmra.mxu0 %v802
    %v817 = vpop.f32.mrf.mxu0
    %v818 = vadd.f32 %v798, %v817
    %v819 = vpop.f32.mrf.mxu0
    %820 = vdwg.mxu0
    %v821 = vmax.f32 %v818, 0.0
    %v822 = vperm.slane %v134, 0
    %v823 = vmul.f32 %v821, %v822
    %824 = vadd.xlane.f32.xlu0 %v823
    %v825 = vpop.xlane.xlu0 %824
    %v826 = vmul.f32 %v825, 0.010204081
    %v827 = vsub.f32 %v821, %v826
    %v828 = vmul.f32 %v827, %v822
    %v829 = vmul.f32 %v828, %v828
    %830 = vadd.xlane.f32.xlu0 %v829
    %v831 = vpop.xlane.xlu0 %830
    %v832 = vmul.f32 %v831, 0.010204081
    %v833 = vadd.f32 %v832, 1e-05
    %v834 = vrsqrt.pop %v833
    %v835 = vmul.f32 %v834, %v833
    %v836 = vmul.f32 %v835, %v834
    %v837 = vmul.f32 0.5, %v836
    %v838 = vsub.f32 1.5, %v837
    %v839 = vmul.f32 %v834, %v838
    %vm840 = vweird.f32 %v833
    %vm841 = vweird.f32 %v834
    %vm842 = vmor %vm840, %vm841
    %v843 = vsel %vm842, %v834, %v839
    %v844 = vmul.f32 %v827, %v843
    %845 = vset.pattern.permute.xlu0 4
    %846 = vperm.xlu0 %845, %v147
    %v847 = vpop.permute.xlu0 %846
    %v849 = vmul.f32 %v844, %v847
    %850 = vset.pattern.permute.xlu0 5
    %851 = vperm.xlu0 %850, %v147
    %v852 = vpop.permute.xlu0 %851
    %v854 = vadd.f32 %v849, %v852
    %855 = vrot.lane.b32.xlu0 %v854, 127
    %v856 = vpop.permute.xlu0 %855
    %857 = vrot.lane.b32.xlu0 %v854, 126
    %v858 = vpop.permute.xlu0 %857
    %859 = vrot.lane.b32.xlu0 %v854, 121
    %v860 = vpop.permute.xlu0 %859
    %861 = vrot.lane.b32.xlu0 %v854, 120
    %v862 = vpop.permute.xlu0 %861
    %863 = vrot.lane.b32.xlu0 %v854, 119
    %v864 = vpop.permute.xlu0 %863
    %865 = vrot.lane.b32.xlu0 %v854, 114
    %v866 = vpop.permute.xlu0 %865
    %867 = vrot.lane.b32.xlu0 %v854, 113
    %v868 = vpop.permute.xlu0 %867
    %869 = vrot.lane.b32.xlu0 %v854, 112
    %v870 = vpop.permute.xlu0 %869
    %v871 = vpack.c.bf16 %v856, %v854
    %v872 = vpack.c.bf16 %v860, %v858
    %v873 = vpack.c.bf16 %v864, %v862
    %v874 = vpack.c.bf16 %v868, %v866
    %v875 = vpack.c.bf16 %v870, %v870
    %v876 = vld [vmem:[#allocation10] sm:$0xf]
    %877 = vset.pattern.permute.xlu0 6
    %878 = vperm.xlu0 %877, %v147
    %v879 = vpop.permute.xlu0 %878
    %vm881 = vcmask 588800
    %v883 = vsel %vm881, %v876, 0
    %v886 = vsel %vm804, %v875, 0
    %888 = vmatpush.bf16.msra.mxu0 0
    %889 = vmatpush.bf16.msra.mxu0 0
    %890 = vmatpush.bf16.msra.mxu0 0
    %891 = vmatpush.bf16.msra.mxu0 %v886
    %892 = vmatpush.bf16.msra.mxu0 %v874
    %893 = vmatpush.bf16.msra.mxu0 %v873
    %894 = vmatpush.bf16.msra.mxu0 %v872
    %895 = vmatpush.bf16.msra.mxu0 %v871
    %896 = vmatmul.bf16.gmra.mxu0 %v883
    %v897 = vpop.f32.mrf.mxu0
    %v898 = vadd.f32 %v879, %v897
    %v899 = vpop.f32.mrf.mxu0
    %900 = vdwg.mxu0
    %v901 = vmax.f32 %v898, 0.0
    %v902 = vperm.slane %v135, 0
    %v903 = vmul.f32 %v901, %v902
    %904 = vadd.xlane.f32.xlu0 %v903
    %v905 = vpop.xlane.xlu0 %904
    %v906 = vmul.f32 %v905, 0.02
    %v907 = vsub.f32 %v901, %v906
    %v908 = vmul.f32 %v907, %v902
    %v909 = vmul.f32 %v908, %v908
    %910 = vadd.xlane.f32.xlu0 %v909
    %v911 = vpop.xlane.xlu0 %910
    %v912 = vmul.f32 %v911, 0.02
    %v913 = vadd.f32 %v912, 1e-05
    %v914 = vrsqrt.pop %v913
    %v915 = vmul.f32 %v914, %v913
    %v916 = vmul.f32 %v915, %v914
    %v917 = vmul.f32 0.5, %v916
    %v918 = vsub.f32 1.5, %v917
    %v919 = vmul.f32 %v914, %v918
    %vm920 = vweird.f32 %v913
    %vm921 = vweird.f32 %v914
    %vm922 = vmor %vm920, %vm921
    %v923 = vsel %vm922, %v914, %v919
    %v924 = vmul.f32 %v907, %v923
    %925 = vset.pattern.permute.xlu0 7
    %926 = vperm.xlu0 %925, %v147
    %v927 = vpop.permute.xlu0 %926
    %v929 = vmul.f32 %v924, %v927
    %930 = vset.pattern.permute.xlu0 8
    %931 = vperm.xlu0 %930, %v147
    %v932 = vpop.permute.xlu0 %931
    %v934 = vadd.f32 %v929, %v932
    %v935 = vld [vmem:[%s5] sm:$0xf]
    %v936 = vpack.c.bf16 %v934, %v934
    %937 = vset.pattern.permute.xlu0 9
    %938 = vperm.xlu0 %937, %v147
    %v939 = vpop.permute.xlu0 %938
    %v942 = vsel %vm800, %v935, 0
    %v945 = vsel %vm804, %v936, 0
    %947 = vmatpush.bf16.msra.mxu0 0
    %948 = vmatpush.bf16.msra.mxu0 0
    %949 = vmatpush.bf16.msra.mxu0 0
    %950 = vmatpush.bf16.msra.mxu0 0
    %951 = vmatpush.bf16.msra.mxu0 0
    %952 = vmatpush.bf16.msra.mxu0 0
    %953 = vmatpush.bf16.msra.mxu0 0
    %954 = vmatpush.bf16.msra.mxu0 %v945
    %955 = vmatmul.bf16.gmra.mxu0 %v942
    %v956 = vpop.f32.mrf.mxu0
    %v957 = vadd.f32 %v939, %v956
    %v958 = vpop.f32.mrf.mxu0
    %959 = vdwg.mxu0
    %v960 = vmax.f32 %v957, 0.0
    %v961 = vmul.f32 %v960, %v902
    %962 = vadd.xlane.f32.xlu0 %v961
    %v963 = vpop.xlane.xlu0 %962
    %v964 = vmul.f32 %v963, 0.02
    %v965 = vsub.f32 %v960, %v964
    %v966 = vmul.f32 %v965, %v902
    %v967 = vmul.f32 %v966, %v966
    %968 = vadd.xlane.f32.xlu0 %v967
    %v969 = vpop.xlane.xlu0 %968
    %v970 = vmul.f32 %v969, 0.02
    %v971 = vadd.f32 %v970, 1e-05
    %v972 = vrsqrt.pop %v971
    %v973 = vmul.f32 %v972, %v971
    %v974 = vmul.f32 %v973, %v972
    %v975 = vmul.f32 0.5, %v974
    %v976 = vsub.f32 1.5, %v975
    %v977 = vmul.f32 %v972, %v976
    %vm978 = vweird.f32 %v971
    %vm979 = vweird.f32 %v972
    %vm980 = vmor %vm978, %vm979
    %v981 = vsel %vm980, %v972, %v977
    %v982 = vmul.f32 %v965, %v981
    %983 = vset.pattern.permute.xlu0 10
    %984 = vperm.xlu0 %983, %v147
    %v985 = vpop.permute.xlu0 %984
    %v987 = vmul.f32 %v982, %v985
    %988 = vset.pattern.permute.xlu0 11
    %989 = vperm.xlu0 %988, %v147
    %v990 = vpop.permute.xlu0 %989
    %v992 = vadd.f32 %v987, %v990
    %993 = vst [vmem:[#allocation14] sm:$0xff] %v992
    // Predicated region
    $region66: #{tpu_custom_call.1} parent=1 // pred_check
      _
    $region67: #{tpu_custom_call.1} parent=1 // pred_check_branch
      %995 = sbr.rel (0) target = $region69
    $region68: #{tpu_custom_call.1} parent=1 // pred_region
      %997 = vsyncadd [#allocation4], 0
      %s999 = sshll.u32 [#allocation14], 4
      %s1000 = int_to_ptr.vmem [resolvable:$true] %s999
      %s1001 = sshll.u32 %s9, 4
      %s1002 = int_to_ptr.hbm [resolvable:$true] %s1001
      %1004 = dma.vmem_to_hbm [thread:$0]  %s1000, 128, %s1002, [#allocation4]
    $region69: #{tpu_custom_call.1} parent=1 // pred_fallthru
      _
    // Predicated region
    $region70: #{tpu_custom_call.1} parent=1 // pred_check
      _
    $region71: #{tpu_custom_call.1} parent=1 // pred_check_branch
      %1006 = sbr.rel (0) target = $region73
    $region72: #{tpu_custom_call.1} parent=1 // pred_region
      %1008 = dma.done [#allocation4], 128
    $region73: #{tpu_custom_call.1} parent=1 // pred_fallthru
      _
    %1009 = vsyncpa [#allocation3], 1
    %1010 = vsyncpa [#allocation6], 1
    %1011 = vsyncpa [#allocation9], 1
    %1012 = vsyncpa [#allocation12], 1
    %1013 = vsyncpa [#allocation4], 1

</llo_original>
